<compile_context>
chip_gen: v7x
topology: tpu7x:2x2x1
jax: 0.10.0
libtpu: 0.0.40
codegen_flags: <defaults>
</compile_context>

<pallas_src>
import functools

import numpy as np
import jax
import jax.numpy as jnp
from jax import lax
from jax.experimental import pallas as pl
from jax.experimental.pallas import tpu as pltpu


def _bilinear_matrix_align_corners(out_size: int, in_size: int) -> np.ndarray:
    """Interpolation matrix M (out_size, in_size): out = M @ in, align_corners=True."""
    M = np.zeros((out_size, in_size), dtype=np.float32)
    if in_size == 1 or out_size == 1:
        M[:, 0] = 1.0
        return M
    src = np.arange(out_size, dtype=np.float64) * (in_size - 1) / (out_size - 1)
    i0 = np.clip(np.floor(src).astype(np.int64), 0, in_size - 1)
    i1 = np.clip(i0 + 1, 0, in_size - 1)
    frac = (src - i0).astype(np.float32)
    M[np.arange(out_size), i0] += (1.0 - frac)
    M[np.arange(out_size), i1] += frac
    return M


def _pick_tile_h(h: int) -> int:
    """Largest row tile <= 128 that divides H (fallback: whole H)."""
    if h <= 128:
        return h
    for t in (128, 64, 32, 16, 8):
        if h % t == 0:
            return t
    return h


def _ce_rowsum_kernel(x_ref, ry_ref, rxt_ref, t_ref, loss_ref, z_ref, *,
                      num_classes: int, h0: int, ignore_index):
    """One (head, batch, h_tile) grid step.

    x_ref   : (C*H0, W0)   low-res logits, channels folded into rows (native dtype)
    ry_ref  : (TILE_H, H0) row-interpolation tile (f32)
    rxt_ref : (W0, W)      column-interpolation matrix, transposed (f32)
    t_ref   : (TILE_H, W)  int32 targets
    loss_ref: (TILE_H, 1)  per-row sum of the pixel CE loss (ignored pixels = 0)
    z_ref   : (C*H0, W)    f32 scratch: W-interpolated logits, persistent per (head,b)
    """
    # W-interpolation once per (head, batch): one big channel-folded MXU matmul.
    @pl.when(pl.program_id(2) == 0)
    def _():
        z_ref[...] = jnp.dot(x_ref[...].astype(jnp.float32), rxt_ref[...],
                             preferred_element_type=jnp.float32)

    ry = ry_ref[...].astype(jnp.float32)          # (TILE_H, H0)
    t = t_ref[...]                                 # (TILE_H, W) int32
    tile_h, w = t.shape

    # Online softmax over channels: only one upsampled channel plane live at a time.
    m0 = jnp.full((tile_h, w), -jnp.inf, dtype=jnp.float32)
    s0 = jnp.zeros((tile_h, w), dtype=jnp.float32)
    lt0 = jnp.zeros((tile_h, w), dtype=jnp.float32)

    def body(c, carry):
        m, s, lt = carry
        start = pl.multiple_of(c * h0, h0)
        zc = z_ref[pl.ds(start, h0), :]                                  # (H0, W)
        lc = jnp.dot(ry, zc, preferred_element_type=jnp.float32)         # (TILE_H, W)
        m_new = jnp.maximum(m, lc)
        s = s * jnp.exp(m - m_new) + jnp.exp(lc - m_new)
        lt = jnp.where(t == c, lc, lt)
        return m_new, s, lt

    unroll = True if num_classes <= 8 else 2
    m, s, lt = lax.fori_loop(0, num_classes, body, (m0, s0, lt0), unroll=unroll)

    pix = m + jnp.log(s) - lt                      # -log softmax[target]
    if ignore_index is not None:
        pix = jnp.where(t == ignore_index, 0.0, pix)

    # In-kernel reduction: per-row sums only (tiny HBM write-back).
    loss_ref[...] = jnp.sum(pix, axis=-1, keepdims=True)


def _ce_head_loss_sums(stacked_logits, targets_i32, ignore_index):
    """stacked_logits: (NH, B, C, H0, W0) -> (NH,) un-normalized CE sums."""
    nh, b, c, h0, w0 = stacked_logits.shape
    h, w = targets_i32.shape[1], targets_i32.shape[2]
    tile_h = _pick_tile_h(h)
    n_tiles = h // tile_h

    ry = jnp.asarray(_bilinear_matrix_align_corners(h, h0))        # (H, H0) f32
    rxt = jnp.asarray(_bilinear_matrix_align_corners(w, w0).T)     # (W0, W) f32
    # Fold channels into rows (contiguous reshape, no transpose); keep native dtype.
    x2 = stacked_logits.reshape(nh, b, c * h0, w0)

    kern = functools.partial(_ce_rowsum_kernel, num_classes=c, h0=h0,
                             ignore_index=ignore_index)

    row_sums = pl.pallas_call(
        kern,
        out_shape=jax.ShapeDtypeStruct((nh, b, h, 1), jnp.float32),
        grid=(nh, b, n_tiles),
        in_specs=[
            pl.BlockSpec((None, None, c * h0, w0), lambda hh, bb, tt: (hh, bb, 0, 0)),
            pl.BlockSpec((tile_h, h0), lambda hh, bb, tt: (tt, 0)),
            pl.BlockSpec((w0, w), lambda hh, bb, tt: (0, 0)),
            pl.BlockSpec((None, tile_h, w), lambda hh, bb, tt: (bb, tt, 0)),
        ],
        out_specs=pl.BlockSpec((None, None, tile_h, 1),
                               lambda hh, bb, tt: (hh, bb, tt, 0)),
        scratch_shapes=[pltpu.VMEM((c * h0, w), jnp.float32)],
        compiler_params=pltpu.CompilerParams(
            dimension_semantics=("parallel", "parallel", "arbitrary")),
    )(x2, ry, rxt, targets_i32)

    return jnp.sum(row_sums, axis=(1, 2, 3))       # (NH,)


def segmentation_loss(preds, targets, ignore_index=None):
    """Equivalent of SegmentationLoss.forward(preds, targets)."""
    targets_i32 = targets.astype(jnp.int32)
    b, h, w = targets_i32.shape
    p_main, p_dsn = preds[0], preds[-1]

    if p_main.shape == p_dsn.shape and p_main.dtype == p_dsn.dtype:
        # Fused: both heads in one pallas_call (targets / Ry / Rxt streamed once).
        stacked = jnp.stack([p_main, p_dsn], axis=0)
        sums = _ce_head_loss_sums(stacked, targets_i32, ignore_index)
        weighted_sum = sums[0] + 0.4 * sums[1]
    else:
        s_main = _ce_head_loss_sums(p_main[None], targets_i32, ignore_index)[0]
        s_dsn = _ce_head_loss_sums(p_dsn[None], targets_i32, ignore_index)[0]
        weighted_sum = s_main + 0.4 * s_dsn

    if ignore_index is not None:
        # Matches PyTorch CrossEntropyLoss(mean): 0/0 -> NaN if every pixel ignored.
        denom = jnp.sum(targets_i32 != ignore_index).astype(jnp.float32)
    else:
        denom = jnp.asarray(b * h * w, dtype=jnp.float32)
    return weighted_sum / denom


def _reference_loss(preds, targets, ignore_index=None):
    """Pure-JAX reference (bilinear align_corners resize + CE mean)."""
    h, w = targets.shape[1], targets.shape[2]
    t = targets.astype(jnp.int32)

    def ce(logits_nchw):
        _, _, h0, w0 = logits_nchw.shape
        ry = jnp.asarray(_bilinear_matrix_align_corners(h, h0))
        rx = jnp.asarray(_bilinear_matrix_align_corners(w, w0))
        up = jnp.einsum('hi,bcij,wj->bchw', ry, logits_nchw.astype(jnp.float32), rx)
        logz = jax.nn.logsumexp(up, axis=1)                          # (B,H,W)
        lt = jnp.take_along_axis(up, t[:, None, :, :], axis=1)[:, 0]  # (B,H,W)
        pix = logz - lt
        if ignore_index is not None:
            valid = t != ignore_index
            return jnp.sum(jnp.where(valid, pix, 0.0)) / jnp.sum(valid)
        return jnp.mean(pix)

    return ce(preds[0]) + 0.4 * ce(preds[-1])


if __name__ == "__main__":
    key = jax.random.PRNGKey(0)
    k1, k2, k3 = jax.random.split(key, 3)

    B, C, H, W = 2, 4, 16, 16
    pred_main = jax.random.normal(k1, (B, C, 8, 8), dtype=jnp.float32)   # main head
    pred_dsn = jax.random.normal(k2, (B, C, 8, 8), dtype=jnp.float32)    # DSN head
    targets = jax.random.randint(k3, (B, H, W), 0, C, dtype=jnp.int32)

    loss = segmentation_loss([pred_main, pred_dsn], targets, ignore_index=None)
    jax.block_until_ready(loss)

    ref = _reference_loss([pred_main, pred_dsn], targets, ignore_index=None)
    np.testing.assert_allclose(np.asarray(loss), np.asarray(ref), rtol=2e-2, atol=2e-2)

    print("KERNEL_OK")
</pallas_src>

<mosaic_0001>
module attributes {stable_mosaic.version = 11 : i64} {
  func.func @_ce_rowsum_kernel(%arg0: i32, %arg1: i32, %arg2: i32, %arg3: memref<1x1x32x8xf32, #tpu.memory_space<vmem>>, %arg4: memref<16x8xf32, #tpu.memory_space<vmem>>, %arg5: memref<8x16xf32, #tpu.memory_space<vmem>>, %arg6: memref<1x16x16xi32, #tpu.memory_space<vmem>>, %arg7: memref<1x1x16x1xf32, #tpu.memory_space<vmem>>, %arg8: memref<32x16xf32, #tpu.memory_space<vmem>>) attributes {dimension_semantics = [#tpu.dimension_semantics<parallel>, #tpu.dimension_semantics<parallel>, #tpu.dimension_semantics<arbitrary>], iteration_bounds = array<i64: 2, 2, 1>, scalar_prefetch = 0 : i64, scratch_operands = 1 : i64, tpu.core_type = #tpu.core_type<tc>, window_params = [{transform_indices = @transform_0, window_bounds = array<i64: 1, 1, 32, 8>}, {transform_indices = @transform_1, window_bounds = array<i64: 16, 8>}, {pipeline_mode = #tpu.pipeline_mode<synchronous>, transform_indices = @transform_2, window_bounds = array<i64: 8, 16>}, {transform_indices = @transform_3, window_bounds = array<i64: 1, 16, 16>}, {transform_indices = @transform_4, window_bounds = array<i64: 1, 1, 16, 1>}]} {
    %c0_i32 = arith.constant 0 : i32
    %0 = arith.cmpi eq, %arg2, %c0_i32 : i32
    %1 = arith.extui %0 : i1 to i32
    %c0_i32_0 = arith.constant 0 : i32
    %2 = arith.cmpi ne, %1, %c0_i32_0 : i32
    scf.if %2 {
      %c0_24 = arith.constant 0 : index
      %c0_25 = arith.constant 0 : index
      %c0_26 = arith.constant 0 : index
      %c0_27 = arith.constant 0 : index
      %77 = vector.load %arg3[%c0_24, %c0_25, %c0_26, %c0_27] : memref<1x1x32x8xf32, #tpu.memory_space<vmem>>, vector<1x1x32x8xf32>
      %78 = vector.shape_cast %77 : vector<1x1x32x8xf32> to vector<32x8xf32>
      %c0_28 = arith.constant 0 : index
      %c0_29 = arith.constant 0 : index
      %79 = vector.load %arg5[%c0_28, %c0_29] : memref<8x16xf32, #tpu.memory_space<vmem>>, vector<8x16xf32>
      %cst_30 = arith.constant dense<0.000000e+00> : vector<32x16xf32>
      %80 = tpu.matmul %78, %79, %cst_30 {dimension_numbers = #tpu.dot_dimension_numbers<[1], [0], [0], [1], [0, 0, 1, 1], [], []>} : vector<32x8xf32>, vector<8x16xf32>, vector<32x16xf32> -> vector<32x16xf32>
      %c0_31 = arith.constant 0 : index
      %c0_32 = arith.constant 0 : index
      %81 = vector.load %arg8[%c0_31, %c0_32] : memref<32x16xf32, #tpu.memory_space<vmem>>, vector<32x16xf32>
      tpu.vector_store %arg8[%c0_31, %c0_32], %80 {strides = array<i32>} : memref<32x16xf32, #tpu.memory_space<vmem>>, vector<32x16xf32>,
    } else {
    }
    %c0 = arith.constant 0 : index
    %c0_1 = arith.constant 0 : index
    %3 = vector.load %arg4[%c0, %c0_1] : memref<16x8xf32, #tpu.memory_space<vmem>>, vector<16x8xf32>
    %c0_2 = arith.constant 0 : index
    %c0_3 = arith.constant 0 : index
    %c0_4 = arith.constant 0 : index
    %4 = vector.load %arg6[%c0_2, %c0_3, %c0_4] : memref<1x16x16xi32, #tpu.memory_space<vmem>>, vector<1x16x16xi32>
    %5 = vector.shape_cast %4 : vector<1x16x16xi32> to vector<16x16xi32>
    %cst = arith.constant 0xFF800000 : f32
    %6 = vector.broadcast %cst : f32 to vector<16x16xf32>
    %cst_5 = arith.constant 0.000000e+00 : f32
    %7 = vector.broadcast %cst_5 : f32 to vector<16x16xf32>
    %cst_6 = arith.constant 0.000000e+00 : f32
    %8 = vector.broadcast %cst_6 : f32 to vector<16x16xf32>
    %c0_i32_7 = arith.constant 0 : i32
    %c8_i32 = arith.constant 8 : i32
    %9 = arith.muli %c0_i32_7, %c8_i32 : i32
    %10 = tpu.assume_multiple %9, 8 : i32
    %11 = arith.index_cast %10 : i32 to index
    %c0_8 = arith.constant 0 : index
    %12 = vector.load %arg8[%11, %c0_8] : memref<32x16xf32, #tpu.memory_space<vmem>>, vector<8x16xf32>
    %cst_9 = arith.constant dense<0.000000e+00> : vector<16x16xf32>
    %13 = tpu.matmul %3, %12, %cst_9 {dimension_numbers = #tpu.dot_dimension_numbers<[1], [0], [0], [1], [0, 0, 1, 1], [], []>} : vector<16x8xf32>, vector<8x16xf32>, vector<16x16xf32> -> vector<16x16xf32>
    %14 = arith.maximumf %6, %13 : vector<16x16xf32>
    %15 = arith.subf %6, %14 : vector<16x16xf32>
    %16 = math.exp %15 : vector<16x16xf32>
    %17 = arith.mulf %7, %16 : vector<16x16xf32>
    %18 = arith.subf %13, %14 : vector<16x16xf32>
    %19 = math.exp %18 : vector<16x16xf32>
    %20 = arith.addf %17, %19 : vector<16x16xf32>
    %21 = vector.broadcast %c0_i32_7 : i32 to vector<16x16xi32>
    %22 = arith.cmpi eq, %5, %21 : vector<16x16xi32>
    %23 = arith.select %22, %13, %8 : vector<16x16xi1>, vector<16x16xf32>
    %c1_i32 = arith.constant 1 : i32
    %c8_i32_10 = arith.constant 8 : i32
    %24 = arith.muli %c1_i32, %c8_i32_10 : i32
    %25 = tpu.assume_multiple %24, 8 : i32
    %26 = arith.index_cast %25 : i32 to index
    %c0_11 = arith.constant 0 : index
    %27 = vector.load %arg8[%26, %c0_11] : memref<32x16xf32, #tpu.memory_space<vmem>>, vector<8x16xf32>
    %cst_12 = arith.constant dense<0.000000e+00> : vector<16x16xf32>
    %28 = tpu.matmul %3, %27, %cst_12 {dimension_numbers = #tpu.dot_dimension_numbers<[1], [0], [0], [1], [0, 0, 1, 1], [], []>} : vector<16x8xf32>, vector<8x16xf32>, vector<16x16xf32> -> vector<16x16xf32>
    %29 = arith.maximumf %14, %28 : vector<16x16xf32>
    %30 = arith.subf %14, %29 : vector<16x16xf32>
    %31 = math.exp %30 : vector<16x16xf32>
    %32 = arith.mulf %20, %31 : vector<16x16xf32>
    %33 = arith.subf %28, %29 : vector<16x16xf32>
    %34 = math.exp %33 : vector<16x16xf32>
    %35 = arith.addf %32, %34 : vector<16x16xf32>
    %36 = vector.broadcast %c1_i32 : i32 to vector<16x16xi32>
    %37 = arith.cmpi eq, %5, %36 : vector<16x16xi32>
    %38 = arith.select %37, %28, %23 : vector<16x16xi1>, vector<16x16xf32>
    %c2_i32 = arith.constant 2 : i32
    %c8_i32_13 = arith.constant 8 : i32
    %39 = arith.muli %c2_i32, %c8_i32_13 : i32
    %40 = tpu.assume_multiple %39, 8 : i32
    %41 = arith.index_cast %40 : i32 to index
    %c0_14 = arith.constant 0 : index
    %42 = vector.load %arg8[%41, %c0_14] : memref<32x16xf32, #tpu.memory_space<vmem>>, vector<8x16xf32>
    %cst_15 = arith.constant dense<0.000000e+00> : vector<16x16xf32>
    %43 = tpu.matmul %3, %42, %cst_15 {dimension_numbers = #tpu.dot_dimension_numbers<[1], [0], [0], [1], [0, 0, 1, 1], [], []>} : vector<16x8xf32>, vector<8x16xf32>, vector<16x16xf32> -> vector<16x16xf32>
    %44 = arith.maximumf %29, %43 : vector<16x16xf32>
    %45 = arith.subf %29, %44 : vector<16x16xf32>
    %46 = math.exp %45 : vector<16x16xf32>
    %47 = arith.mulf %35, %46 : vector<16x16xf32>
    %48 = arith.subf %43, %44 : vector<16x16xf32>
    %49 = math.exp %48 : vector<16x16xf32>
    %50 = arith.addf %47, %49 : vector<16x16xf32>
    %51 = vector.broadcast %c2_i32 : i32 to vector<16x16xi32>
    %52 = arith.cmpi eq, %5, %51 : vector<16x16xi32>
    %53 = arith.select %52, %43, %38 : vector<16x16xi1>, vector<16x16xf32>
    %c3_i32 = arith.constant 3 : i32
    %c8_i32_16 = arith.constant 8 : i32
    %54 = arith.muli %c3_i32, %c8_i32_16 : i32
    %55 = tpu.assume_multiple %54, 8 : i32
    %56 = arith.index_cast %55 : i32 to index
    %c0_17 = arith.constant 0 : index
    %57 = vector.load %arg8[%56, %c0_17] : memref<32x16xf32, #tpu.memory_space<vmem>>, vector<8x16xf32>
    %cst_18 = arith.constant dense<0.000000e+00> : vector<16x16xf32>
    %58 = tpu.matmul %3, %57, %cst_18 {dimension_numbers = #tpu.dot_dimension_numbers<[1], [0], [0], [1], [0, 0, 1, 1], [], []>} : vector<16x8xf32>, vector<8x16xf32>, vector<16x16xf32> -> vector<16x16xf32>
    %59 = arith.maximumf %44, %58 : vector<16x16xf32>
    %60 = arith.subf %44, %59 : vector<16x16xf32>
    %61 = math.exp %60 : vector<16x16xf32>
    %62 = arith.mulf %50, %61 : vector<16x16xf32>
    %63 = arith.subf %58, %59 : vector<16x16xf32>
    %64 = math.exp %63 : vector<16x16xf32>
    %65 = arith.addf %62, %64 : vector<16x16xf32>
    %66 = vector.broadcast %c3_i32 : i32 to vector<16x16xi32>
    %67 = arith.cmpi eq, %5, %66 : vector<16x16xi32>
    %68 = arith.select %67, %58, %53 : vector<16x16xi1>, vector<16x16xf32>
    %c4_i32 = arith.constant 4 : i32
    %69 = math.log %65 : vector<16x16xf32>
    %70 = arith.addf %59, %69 : vector<16x16xf32>
    %71 = arith.subf %70, %68 : vector<16x16xf32>
    %cst_19 = arith.constant dense<0.000000e+00> : vector<16xf32>
    %72 = vector.multi_reduction <add>, %71, %cst_19 [1] : vector<16x16xf32> to vector<16xf32>
    %73 = vector.shape_cast %72 : vector<16xf32> to vector<16x1xf32>
    %c0_20 = arith.constant 0 : index
    %c0_21 = arith.constant 0 : index
    %c0_22 = arith.constant 0 : index
    %c0_23 = arith.constant 0 : index
    %74 = vector.load %arg7[%c0_20, %c0_21, %c0_22, %c0_23] : memref<1x1x16x1xf32, #tpu.memory_space<vmem>>, vector<1x1x16x1xf32>
    %75 = vector.shape_cast %74 : vector<1x1x16x1xf32> to vector<16x1xf32>
    %76 = vector.shape_cast %73 : vector<16x1xf32> to vector<1x1x16x1xf32>
    tpu.vector_store %arg7[%c0_20, %c0_21, %c0_22, %c0_23], %76 {strides = array<i32>} : memref<1x1x16x1xf32, #tpu.memory_space<vmem>>, vector<1x1x16x1xf32>,
    return
  }
  func.func @transform_0(%arg0: i32, %arg1: i32, %arg2: i32) -> (i32, i32, i32, i32) {
    %c0_i32 = arith.constant 0 : i32
    %c0_i32_0 = arith.constant 0 : i32
    %c0_i32_1 = arith.constant 0 : i32
    return %arg0, %arg1, %c0_i32, %c0_i32_0 : i32, i32, i32, i32
  }
  func.func @transform_1(%arg0: i32, %arg1: i32, %arg2: i32) -> (i32, i32) {
    %c0_i32 = arith.constant 0 : i32
    %c0_i32_0 = arith.constant 0 : i32
    return %arg2, %c0_i32 : i32, i32
  }
  func.func @transform_2(%arg0: i32, %arg1: i32, %arg2: i32) -> (i32, i32) {
    %c0_i32 = arith.constant 0 : i32
    %c0_i32_0 = arith.constant 0 : i32
    %c0_i32_1 = arith.constant 0 : i32
    return %c0_i32, %c0_i32_0 : i32, i32
  }
  func.func @transform_3(%arg0: i32, %arg1: i32, %arg2: i32) -> (i32, i32, i32) {
    %c0_i32 = arith.constant 0 : i32
    %c0_i32_0 = arith.constant 0 : i32
    return %arg1, %arg2, %c0_i32 : i32, i32, i32
  }
  func.func @transform_4(%arg0: i32, %arg1: i32, %arg2: i32) -> (i32, i32, i32, i32) {
    %c0_i32 = arith.constant 0 : i32
    %c0_i32_0 = arith.constant 0 : i32
    return %arg0, %arg1, %arg2, %c0_i32 : i32, i32, i32, i32
  }
}

</mosaic_0001>

<llo_original>
// kernel: tpu_custom_call.1
$region0: #{tpu_custom_call.1}
  #allocation0 [shape = 'u32[]', space=smem, size = 0x4, offset = 0x4, fixed_abs, tag = 'smem constant byte address 0x4 - core index']
  #allocation1 [shape = 'u32[144,128]{1,0:T(1,128)}', space=vmem, size = 0x12000, scoped, tag = 'internal scratch']
  #allocation2 [shape = 'f32[32,16]{1,0:T(8,128)}', space=vmem, size = 0x4000, scoped, tag = 'scratch operand']
  %s0 = inlined_call_operand.vmem [shape: f32[2,2,32,8], index: 0, kind: input, shape index: {}]
  %s1 = inlined_call_operand.vmem [shape: f32[16,8], index: 1, kind: input, shape index: {}]
  %s2 = inlined_call_operand.vmem [shape: f32[8,16], index: 2, kind: input, shape index: {}]
  %s3 = inlined_call_operand.vmem [shape: s32[2,16,16], index: 3, kind: input, shape index: {}]
  %s4 = inlined_call_operand.vmem [shape: f32[2,2,16,1], index: 4, kind: output, shape index: {}]
  %s5 = sld [smem:[#allocation0]]
  $region53: #{tpu_custom_call.1} parent=0
    _
  %s7 = ssub.s32 1, %s5
  %s8 = scalar_select 0, %s7, %s5
  loop: start=0, step=1, limit=6
  $region2: #{tpu_custom_call.1} parent=0 // loop_pre_header
    _
  $region3: #{tpu_custom_call.1} parent=0 // loop_header
    %s10 = sphi 0, %s14
    %p11 = scmp.ge.s32.totalorder %s10, 6
    %s17 = sphi 0, %s36
    %s18 = sphi 0, %s32
    %s19 = sphi 0, %s28
    %s20 = sphi 0, %s17
    %s21 = sphi 0, %s18
    %s22 = sphi 0, %s19
    %s23 = sphi 0, %s20
    %s24 = sphi 0, %s21
    %s25 = sphi 0, %s22
    %s41 = sphi 0, %s43
    %s44 = sphi 0, %s41
    %s45 = sphi 0, %s44
    %s61 = sphi 0, %s45
    %s67 = sphi 0, %s69
    %s70 = sphi 0, %s67
    %s71 = sphi 0, %s70
    %s87 = sphi 0, %s71
    %s91 = sphi 0, %s91
    %s93 = sphi 0, %s91
    %s94 = sphi 0, %s93
    %s108 = sphi 0, %s94
    %s116 = sphi 0, %s118
    %s119 = sphi 0, %s116
    %s120 = sphi 0, %s119
    %s136 = sphi 0, %s120
    %s146 = sphi 0, %s148
    %s149 = sphi 0, %s146
    %s150 = sphi 0, %s149
    %s166 = sphi 0, %s150
  $region4: #{tpu_custom_call.1} parent=0 // loop_header_branch
    %13 = sbr.rel (%p11) target = $region8
  $region5: #{tpu_custom_call.1} parent=0 // loop_body
    %s15 = ssub.s32 %s10, 1
    %s16 = ssub.s32 %s10, 2
    %s26 = sadd.s32 1, %s19
    %p27 = scmp.ge.s32.totalorder %s26, 1
    %s28 = scalar_select %p27, 0, %s26
    %s29 = sadd.s32 1, %s18
    %s30 = scalar_select %p27, %s29, %s18
    %p31 = scmp.ge.s32.totalorder %s30, 2
    %s32 = scalar_select %p31, 0, %s30
    %s33 = sadd.s32 1, %s17
    %s34 = scalar_select %p31, %s33, %s17
    %p35 = scmp.ge.s32.totalorder %s34, 2
    %s36 = scalar_select %p35, 0, %s34
    %s37 = ssub.s32 %s17, %s36
    %s38 = ssub.s32 %s18, %s32
    %s39 = sor.u32 %s37, %s38
    %p40 = scmp.eq.s32.totalorder %s39, 0
    %s42 = sadd.s32 %s41, 1
    %s43 = scalar_select %p40, %s41, %s42
    %p46 = pneg %p40
    %p47 = scmp.eq.s32.totalorder %s10, 3
    %p48 = por %p46, %p47
    %p49 = scmp.ne.s32.totalorder %s41, %s44
    %p50 = scmp.eq.s32.totalorder %s10, 0
    %p51 = por %p49, %p50
    %p52 = scmp.ne.s32.totalorder %s41, %s44
    %p53 = scmp.eq.s32.totalorder %s15, 3
    %p54 = por %p52, %p53
    %p55 = scmp.ne.s32.totalorder %s44, %s45
    %p56 = scmp.eq.s32.totalorder %s15, 0
    %p57 = por %p55, %p56
    %p58 = scmp.ne.s32.totalorder %s44, %s45
    %p59 = scmp.eq.s32.totalorder %s16, 3
    %p60 = por %p58, %p59
    %p62 = scmp.ne.s32.totalorder %s45, %s61
    %p63 = scmp.eq.s32.totalorder %s16, 0
    %p64 = por %p62, %p63
    %s65 = ssub.s32 %s19, %s28
    %p66 = scmp.eq.s32.totalorder %s65, 0
    %s68 = sadd.s32 %s67, 1
    %s69 = scalar_select %p66, %s67, %s68
    %p72 = pneg %p66
    %p73 = scmp.eq.s32.totalorder %s10, 3
    %p74 = por %p72, %p73
    %p75 = scmp.ne.s32.totalorder %s67, %s70
    %p76 = scmp.eq.s32.totalorder %s10, 0
    %p77 = por %p75, %p76
    %p78 = scmp.ne.s32.totalorder %s67, %s70
    %p79 = scmp.eq.s32.totalorder %s15, 3
    %p80 = por %p78, %p79
    %p81 = scmp.ne.s32.totalorder %s70, %s71
    %p82 = scmp.eq.s32.totalorder %s15, 0
    %p83 = por %p81, %p82
    %p84 = scmp.ne.s32.totalorder %s70, %s71
    %p85 = scmp.eq.s32.totalorder %s16, 3
    %p86 = por %p84, %p85
    %p88 = scmp.ne.s32.totalorder %s71, %s87
    %p89 = scmp.eq.s32.totalorder %s16, 0
    %p90 = por %p88, %p89
    %s92 = sadd.s32 %s91, 1
    %p95 = scmp.eq.s32.totalorder %s10, 3
    %p96 = scmp.ne.s32.totalorder %s91, %s93
    %p97 = scmp.eq.s32.totalorder %s10, 0
    %p98 = por %p96, %p97
    %p99 = scmp.ne.s32.totalorder %s91, %s93
    %p100 = scmp.eq.s32.totalorder %s15, 3
    %p101 = por %p99, %p100
    %p102 = scmp.ne.s32.totalorder %s93, %s94
    %p103 = scmp.eq.s32.totalorder %s15, 0
    %p104 = por %p102, %p103
    %p105 = scmp.ne.s32.totalorder %s93, %s94
    %p106 = scmp.eq.s32.totalorder %s16, 3
    %p107 = por %p105, %p106
    %p109 = scmp.ne.s32.totalorder %s94, %s108
    %p110 = scmp.eq.s32.totalorder %s16, 0
    %p111 = por %p109, %p110
    %s112 = ssub.s32 %s18, %s32
    %s113 = ssub.s32 %s19, %s28
    %s114 = sor.u32 %s112, %s113
    %p115 = scmp.eq.s32.totalorder %s114, 0
    %s117 = sadd.s32 %s116, 1
    %s118 = scalar_select %p115, %s116, %s117
    %p121 = pneg %p115
    %p122 = scmp.eq.s32.totalorder %s10, 3
    %p123 = por %p121, %p122
    %p124 = scmp.ne.s32.totalorder %s116, %s119
    %p125 = scmp.eq.s32.totalorder %s10, 0
    %p126 = por %p124, %p125
    %p127 = scmp.ne.s32.totalorder %s116, %s119
    %p128 = scmp.eq.s32.totalorder %s15, 3
    %p129 = por %p127, %p128
    %p130 = scmp.ne.s32.totalorder %s119, %s120
    %p131 = scmp.eq.s32.totalorder %s15, 0
    %p132 = por %p130, %p131
    %p133 = scmp.ne.s32.totalorder %s119, %s120
    %p134 = scmp.eq.s32.totalorder %s16, 3
    %p135 = por %p133, %p134
    %p137 = scmp.ne.s32.totalorder %s120, %s136
    %p138 = scmp.eq.s32.totalorder %s16, 0
    %p139 = por %p137, %p138
    %s140 = ssub.s32 %s17, %s36
    %s141 = ssub.s32 %s18, %s32
    %s142 = sor.u32 %s140, %s141
    %s143 = ssub.s32 %s19, %s28
    %s144 = sor.u32 %s142, %s143
    %p145 = scmp.eq.s32.totalorder %s144, 0
    %s147 = sadd.s32 %s146, 1
    %s148 = scalar_select %p145, %s146, %s147
    %p151 = pneg %p145
    %p152 = scmp.eq.s32.totalorder %s10, 3
    %p153 = por %p151, %p152
    %p154 = scmp.ne.s32.totalorder %s146, %s149
    %p155 = scmp.eq.s32.totalorder %s10, 0
    %p156 = por %p154, %p155
    %p157 = scmp.ne.s32.totalorder %s146, %s149
    %p158 = scmp.eq.s32.totalorder %s15, 3
    %p159 = por %p157, %p158
    %p160 = scmp.ne.s32.totalorder %s149, %s150
    %p161 = scmp.eq.s32.totalorder %s15, 0
    %p162 = por %p160, %p161
    %p163 = scmp.ne.s32.totalorder %s149, %s150
    %p164 = scmp.eq.s32.totalorder %s16, 3
    %p165 = por %p163, %p164
    %p167 = scmp.ne.s32.totalorder %s150, %s166
    %p168 = scmp.eq.s32.totalorder %s16, 0
    %p169 = por %p167, %p168
    %p170 = scmp.le.s32.totalorder 1, %s10
    %p171 = scmp.lt.s32.totalorder %s10, 5
    %p172 = pnand %p170, %p171
    %p173 = pneg %p172
    // Predicated region
    $region9: #{tpu_custom_call.1} parent=5 // pred_check
      _
    $region10: #{tpu_custom_call.1} parent=5 // pred_check_branch
      %175 = sbr.rel (%p172) target = $region12
    $region11: #{tpu_custom_call.1} parent=5 // pred_region
      %s176 = ssub.s32 %s10, 1
      // Predicated region
      $region13: #{tpu_custom_call.1} parent=11 // pred_check
        %p177 = pneg %p83
      $region14: #{tpu_custom_call.1} parent=11 // pred_check_branch
        %179 = sbr.rel (%p177) target = $region16
      $region15: #{tpu_custom_call.1} parent=11 // pred_region
        %s180 = smul.u32 2, %s22
        %p181 = scmp.lt.s32.totalorder %s180, 1
        %s182 = scalar_select %p181, %s180, 1
        %s183 = smul.addr %s182, 8
        %s184 = scalar_lea.vmem %s1, %s183
        %s185 = smul.u32 2, %s22
      $region16: #{tpu_custom_call.1} parent=11 // pred_fallthru
        _
      // Predicated region
      $region17: #{tpu_custom_call.1} parent=11 // pred_check
        %p186 = pneg %p104
      $region18: #{tpu_custom_call.1} parent=11 // pred_check_branch
        %188 = sbr.rel (%p186) target = $region20
      $region19: #{tpu_custom_call.1} parent=11 // pred_region
        _
      $region20: #{tpu_custom_call.1} parent=11 // pred_fallthru
        _
    $region12: #{tpu_custom_call.1} parent=5 // pred_fallthru
      _
    %p189 = scmp.lt.s32.totalorder %s10, 4
    // Predicated region
    $region21: #{tpu_custom_call.1} parent=5 // pred_check
      %p190 = pneg %p189
    $region22: #{tpu_custom_call.1} parent=5 // pred_check_branch
      %192 = sbr.rel (%p190) target = $region24
    $region23: #{tpu_custom_call.1} parent=5 // pred_region
      // Predicated region
      $region25: #{tpu_custom_call.1} parent=23 // pred_check
        %p193 = pneg %p51
      $region26: #{tpu_custom_call.1} parent=23 // pred_check_branch
        %195 = sbr.rel (%p193) target = $region28
      $region27: #{tpu_custom_call.1} parent=23 // pred_region
        %p196 = scmp.lt.s32.totalorder %s17, 1
        %s197 = scalar_select %p196, %s17, 1
        %p198 = scmp.lt.s32.totalorder %s18, 1
        %s199 = scalar_select %p198, %s18, 1
        %s200 = smul.addr %s199, 4
        %s201 = smul.addr %s197, 8
        %s202 = sadd.s32 %s200, %s201
        %s203 = smul.addr %s202, 8
        %s204 = scalar_lea.vmem %s0, %s203
      $region28: #{tpu_custom_call.1} parent=23 // pred_fallthru
        _
      // Predicated region
      $region29: #{tpu_custom_call.1} parent=23 // pred_check
        %p205 = pneg %p126
      $region30: #{tpu_custom_call.1} parent=23 // pred_check_branch
        %207 = sbr.rel (%p205) target = $region32
      $region31: #{tpu_custom_call.1} parent=23 // pred_region
        %s208 = smul.u32 2, %s19
        %p209 = scmp.lt.s32.totalorder %s18, 1
        %s210 = scalar_select %p209, %s18, 1
        %p211 = scmp.lt.s32.totalorder %s208, 1
        %s212 = scalar_select %p211, %s208, 1
        %s213 = smul.addr %s210, 2
        %s214 = sadd.s32 %s212, %s213
        %s215 = smul.addr %s214, 8
        %s216 = scalar_lea.vmem %s3, %s215
        %s217 = smul.u32 2, %s19
      $region32: #{tpu_custom_call.1} parent=23 // pred_fallthru
        _
    $region24: #{tpu_custom_call.1} parent=5 // pred_fallthru
      _
    %p218 = scmp.le.s32.totalorder 1, %s10
    %p219 = scmp.lt.s32.totalorder %s10, 5
    %p220 = pnand %p218, %p219
    %p221 = pneg %p220
    // Predicated region
    $region33: #{tpu_custom_call.1} parent=5 // pred_check
      _
    $region34: #{tpu_custom_call.1} parent=5 // pred_check_branch
      %223 = sbr.rel (%p220) target = $region36
    $region35: #{tpu_custom_call.1} parent=5 // pred_region
      %s224 = ssub.s32 %s10, 1
      %p225 = scmp.lt.s32.totalorder %s20, 1
      %s226 = scalar_select %p225, %s20, 1
      %p227 = scmp.lt.s32.totalorder %s21, 1
      %s228 = scalar_select %p227, %s21, 1
      %s229 = smul.addr %s228, 4
      %s230 = smul.addr %s226, 8
      %s231 = sadd.s32 %s229, %s230
      %s232 = smul.addr %s231, 8
      %s233 = scalar_lea.vmem %s0, %s232
      %p234 = pneg %p57
      %p235 = pneg %p54
      %s236 = smul.u32 2, %s22
      %p237 = scmp.lt.s32.totalorder %s236, 1
      %s238 = scalar_select %p237, %s236, 1
      %s239 = smul.addr %s238, 8
      %s240 = scalar_lea.vmem %s1, %s239
      %p241 = pneg %p83
      %p242 = pneg %p80
      %p243 = pneg %p104
      %p244 = pneg %p101
      %s245 = smul.u32 2, %s22
      %p246 = scmp.lt.s32.totalorder %s21, 1
      %s247 = scalar_select %p246, %s21, 1
      %p248 = scmp.lt.s32.totalorder %s245, 1
      %s249 = scalar_select %p248, %s245, 1
      %s250 = smul.addr %s247, 2
      %s251 = sadd.s32 %s249, %s250
      %s252 = smul.addr %s251, 8
      %s253 = scalar_lea.vmem %s3, %s252
      %p254 = pneg %p132
      %p255 = pneg %p129
      %p256 = pneg %p162
      %p257 = pneg %p159
      %s258 = smul.u32 2, %s22
      %p259 = scmp.lt.s32.totalorder %s20, 1
      %s260 = scalar_select %p259, %s20, 1
      %p261 = scmp.lt.s32.totalorder %s21, 1
      %s262 = scalar_select %p261, %s21, 1
      %p263 = scmp.lt.s32.totalorder %s258, 1
      %s264 = scalar_select %p263, %s258, 1
      %s265 = smul.addr %s262, 2
      %s266 = sadd.s32 %s264, %s265
      %s267 = smul.addr %s260, 4
      %s268 = sadd.s32 %s266, %s267
      %s269 = smul.addr %s268, 8
      %s270 = scalar_lea.vmem %s4, %s269
      %p271 = scmp.lt.s32.totalorder %s20, 1
      %s272 = scalar_select %p271, %s20, 1
      %p273 = scmp.lt.s32.totalorder %s21, 1
      %s274 = scalar_select %p273, %s21, 1
      %s275 = smul.addr %s274, 4
      %s276 = smul.addr %s272, 8
      %s277 = sadd.s32 %s275, %s276
      %s278 = smul.addr %s277, 8
      %s279 = scalar_lea.vmem %s0, %s278
      %s280 = smul.u32 2, %s22
      %p281 = scmp.lt.s32.totalorder %s280, 1
      %s282 = scalar_select %p281, %s280, 1
      %s283 = smul.addr %s282, 8
      %s284 = scalar_lea.vmem %s1, %s283
      %s285 = smul.u32 2, %s22
      %s286 = smul.u32 2, %s22
      %p287 = scmp.lt.s32.totalorder %s21, 1
      %s288 = scalar_select %p287, %s21, 1
      %p289 = scmp.lt.s32.totalorder %s286, 1
      %s290 = scalar_select %p289, %s286, 1
      %s291 = smul.addr %s288, 2
      %s292 = sadd.s32 %s290, %s291
      %s293 = smul.addr %s292, 8
      %s294 = scalar_lea.vmem %s3, %s293
      %s295 = smul.u32 2, %s22
      %s296 = smul.u32 2, %s22
      %p297 = scmp.lt.s32.totalorder %s20, 1
      %s298 = scalar_select %p297, %s20, 1
      %p299 = scmp.lt.s32.totalorder %s21, 1
      %s300 = scalar_select %p299, %s21, 1
      %p301 = scmp.lt.s32.totalorder %s296, 1
      %s302 = scalar_select %p301, %s296, 1
      %s303 = smul.addr %s300, 2
      %s304 = sadd.s32 %s302, %s303
      %s305 = smul.addr %s298, 4
      %s306 = sadd.s32 %s304, %s305
      %s307 = smul.addr %s306, 8
      %s308 = scalar_lea.vmem %s4, %s307
      %s309 = smul.u32 2, %s22
      %p310 = scmp.eq.s32.totalorder %s22, 0
      // Predicated region
      $region37: #{tpu_custom_call.1} parent=35 // pred_check
        %p311 = pneg %p310
      $region38: #{tpu_custom_call.1} parent=35 // pred_check_branch
        %313 = sbr.rel (%p311) target = $region40
      $region39: #{tpu_custom_call.1} parent=35 // pred_region
        %v314 = vld [vmem:[%s279] sm:$0xff]
        %v315 = vld [vmem:[%s279 + $0x8] sm:$0xff]
        %v316 = vld [vmem:[%s279 + $0x10] sm:$0xff]
        %v317 = vld [vmem:[%s279 + $0x18] sm:$0xff]
        %v318 = vld [vmem:[%s2] sm:$0xff]
        %vm319 = vcmask 64512
        %v321 = vsel %vm319, %v314, 0
        %v324 = vsel %vm319, %v315, 0
        %v327 = vsel %vm319, %v316, 0
        %v330 = vsel %vm319, %v317, 0
        %332 = vmatprep.subr.mxu0 0.0
        %333 = vmatpush1.msra.mxu0 %v318
        %334 = vmatprep.subr.mxu0 0.0
        %335 = vmatpush1.msra.mxu0 0.0
        %336 = vmatprep.subr.mxu0 0.0
        %337 = vmatpush1.msra.mxu0 0.0
        %338 = vmatprep.subr.mxu0 0.0
        %339 = vmatpush1.msra.mxu0 0.0
        %340 = vmatprep.subr.mxu0 0.0
        %341 = vmatpush1.msra.mxu0 0.0
        %342 = vmatprep.subr.mxu0 0.0
        %343 = vmatpush1.msra.mxu0 0.0
        %344 = vmatprep.subr.mxu0 0.0
        %345 = vmatpush1.msra.mxu0 0.0
        %346 = vmatprep.subr.mxu0 0.0
        %347 = vmatpush1.msra.mxu0 0.0
        %348 = vmatprep.subr.mxu0 0.0
        %349 = vmatpush1.msra.mxu0 0.0
        %350 = vmatprep.subr.mxu0 0.0
        %351 = vmatpush1.msra.mxu0 0.0
        %352 = vmatprep.subr.mxu0 0.0
        %353 = vmatpush1.msra.mxu0 0.0
        %354 = vmatprep.subr.mxu0 0.0
        %355 = vmatpush1.msra.mxu0 0.0
        %356 = vmatprep.subr.mxu0 0.0
        %357 = vmatpush1.msra.mxu0 0.0
        %358 = vmatprep.subr.mxu0 0.0
        %359 = vmatpush1.msra.mxu0 0.0
        %360 = vmatprep.subr.mxu0 0.0
        %361 = vmatpush1.msra.mxu0 0.0
        %362 = vmatprep.subr.mxu0 0.0
        %363 = vmatpush1.msra.mxu0 0.0
        %364 = vmatprep.subr.mxu0 0.0
        %365 = vmatpush1.msra.mxu0 0.0
        %366 = vmatprep.subr.mxu0 0.0
        %367 = vmatpush1.msra.mxu0 0.0
        %368 = vmatprep.subr.mxu0 0.0
        %369 = vmatpush1.msra.mxu0 0.0
        %370 = vmatprep.subr.mxu0 0.0
        %371 = vmatpush1.msra.mxu0 0.0
        %372 = vmatprep.subr.mxu0 0.0
        %373 = vmatpush1.msra.mxu0 0.0
        %374 = vmatprep.subr.mxu0 0.0
        %375 = vmatpush1.msra.mxu0 0.0
        %376 = vmatprep.subr.mxu0 0.0
        %377 = vmatpush1.msra.mxu0 0.0
        %378 = vmatprep.subr.mxu0 0.0
        %379 = vmatpush1.msra.mxu0 0.0
        %380 = vmatprep.subr.mxu0 0.0
        %381 = vmatpush1.msra.mxu0 0.0
        %382 = vmatprep.subr.mxu0 0.0
        %383 = vmatpush1.msra.mxu0 0.0
        %384 = vmatprep.subr.mxu0 0.0
        %385 = vmatpush1.msra.mxu0 0.0
        %386 = vmatprep.subr.mxu0 0.0
        %387 = vmatpush1.msra.mxu0 0.0
        %388 = vmatprep.subr.mxu0 0.0
        %389 = vmatpush1.msra.mxu0 0.0
        %390 = vmatprep.subr.mxu0 0.0
        %391 = vmatpush1.msra.mxu0 0.0
        %392 = vmatprep.subr.mxu0 0.0
        %393 = vmatpush1.msra.mxu0 0.0
        %394 = vmatprep.subr.mxu0 0.0
        %395 = vmatpush1.msra.mxu0 0.0
        %396 = vmatprep.mubr.f32.mxu0 0.0
        %397 = vmatmul.mubr.f32.gmra.mrb[0].mxu0 %v321
        %v398 = vpop.f32.mrb[0].mxu0
        %v399 = vadd.f32 0.0, %v398
        %v400 = vpop.f32.mrb[0].mxu0
        %401 = vmatprep.mubr.f32.mxu0 0.0
        %402 = vmatmul.mubr.f32.gmra.mrb[0].mxu0 %v324
        %v403 = vpop.f32.mrb[0].mxu0
        %v404 = vadd.f32 0.0, %v403
        %v405 = vpop.f32.mrb[0].mxu0
        %406 = vmatprep.mubr.f32.mxu0 0.0
        %407 = vmatmul.mubr.f32.gmra.mrb[0].mxu0 %v327
        %v408 = vpop.f32.mrb[0].mxu0
        %v409 = vadd.f32 0.0, %v408
        %v410 = vpop.f32.mrb[0].mxu0
        %411 = vmatprep.mubr.f32.mxu0 0.0
        %412 = vmatmul.mubr.f32.gmra.mrb[0].mxu0 %v330
        %v413 = vpop.f32.mrb[0].mxu0
        %v414 = vadd.f32 0.0, %v413
        %v415 = vpop.f32.mrb[0].mxu0
        %416 = vdwg.mxu0
        %vm417 = vcmask 130048
        %418 = vst.msk [vmem:[#allocation2] sm:$0xff] %vm417, %v399
        %419 = vst.msk [vmem:[#allocation2 + $0x8] sm:$0xff] %vm417, %v404
        %420 = vst.msk [vmem:[#allocation2 + $0x10] sm:$0xff] %vm417, %v409
        %421 = vst.msk [vmem:[#allocation2 + $0x18] sm:$0xff] %vm417, %v414
      $region40: #{tpu_custom_call.1} parent=35 // pred_fallthru
        _
      %v422 = vld [vmem:[%s284] sm:$0xff]
      %v423 = vld [vmem:[%s284 + $0x8] sm:$0xff]
      %v424 = vld [vmem:[%s294] sm:$0xff]
      %v425 = vld [vmem:[%s294 + $0x8] sm:$0xff]
      %v426 = vld [vmem:[#allocation2] sm:$0xff]
      %vm427 = vcmask 64512
      %v429 = vsel %vm427, %v422, 0
      %v432 = vsel %vm427, %v423, 0
      %434 = vmatprep.subr.mxu0 0.0
      %435 = vmatpush1.msra.mxu0 %v426
      %436 = vmatprep.subr.mxu0 0.0
      %437 = vmatpush1.msra.mxu0 0.0
      %438 = vmatprep.subr.mxu0 0.0
      %439 = vmatpush1.msra.mxu0 0.0
      %440 = vmatprep.subr.mxu0 0.0
      %441 = vmatpush1.msra.mxu0 0.0
      %442 = vmatprep.subr.mxu0 0.0
      %443 = vmatpush1.msra.mxu0 0.0
      %444 = vmatprep.subr.mxu0 0.0
      %445 = vmatpush1.msra.mxu0 0.0
      %446 = vmatprep.subr.mxu0 0.0
      %447 = vmatpush1.msra.mxu0 0.0
      %448 = vmatprep.subr.mxu0 0.0
      %449 = vmatpush1.msra.mxu0 0.0
      %450 = vmatprep.subr.mxu0 0.0
      %451 = vmatpush1.msra.mxu0 0.0
      %452 = vmatprep.subr.mxu0 0.0
      %453 = vmatpush1.msra.mxu0 0.0
      %454 = vmatprep.subr.mxu0 0.0
      %455 = vmatpush1.msra.mxu0 0.0
      %456 = vmatprep.subr.mxu0 0.0
      %457 = vmatpush1.msra.mxu0 0.0
      %458 = vmatprep.subr.mxu0 0.0
      %459 = vmatpush1.msra.mxu0 0.0
      %460 = vmatprep.subr.mxu0 0.0
      %461 = vmatpush1.msra.mxu0 0.0
      %462 = vmatprep.subr.mxu0 0.0
      %463 = vmatpush1.msra.mxu0 0.0
      %464 = vmatprep.subr.mxu0 0.0
      %465 = vmatpush1.msra.mxu0 0.0
      %466 = vmatprep.subr.mxu0 0.0
      %467 = vmatpush1.msra.mxu0 0.0
      %468 = vmatprep.subr.mxu0 0.0
      %469 = vmatpush1.msra.mxu0 0.0
      %470 = vmatprep.subr.mxu0 0.0
      %471 = vmatpush1.msra.mxu0 0.0
      %472 = vmatprep.subr.mxu0 0.0
      %473 = vmatpush1.msra.mxu0 0.0
      %474 = vmatprep.subr.mxu0 0.0
      %475 = vmatpush1.msra.mxu0 0.0
      %476 = vmatprep.subr.mxu0 0.0
      %477 = vmatpush1.msra.mxu0 0.0
      %478 = vmatprep.subr.mxu0 0.0
      %479 = vmatpush1.msra.mxu0 0.0
      %480 = vmatprep.subr.mxu0 0.0
      %481 = vmatpush1.msra.mxu0 0.0
      %482 = vmatprep.subr.mxu0 0.0
      %483 = vmatpush1.msra.mxu0 0.0
      %484 = vmatprep.subr.mxu0 0.0
      %485 = vmatpush1.msra.mxu0 0.0
      %486 = vmatprep.subr.mxu0 0.0
      %487 = vmatpush1.msra.mxu0 0.0
      %488 = vmatprep.subr.mxu0 0.0
      %489 = vmatpush1.msra.mxu0 0.0
      %490 = vmatprep.subr.mxu0 0.0
      %491 = vmatpush1.msra.mxu0 0.0
      %492 = vmatprep.subr.mxu0 0.0
      %493 = vmatpush1.msra.mxu0 0.0
      %494 = vmatprep.subr.mxu0 0.0
      %495 = vmatpush1.msra.mxu0 0.0
      %496 = vmatprep.subr.mxu0 0.0
      %497 = vmatpush1.msra.mxu0 0.0
      %498 = vmatprep.mubr.f32.mxu0 0.0
      %499 = vmatmul.mubr.f32.gmra.mrb[0].mxu0 %v429
      %v500 = vpop.f32.mrb[0].mxu0
      %v501 = vadd.f32 0.0, %v500
      %v502 = vpop.f32.mrb[0].mxu0
      %503 = vmatprep.mubr.f32.mxu0 0.0
      %504 = vmatmul.mubr.f32.gmra.mrb[0].mxu0 %v432
      %v505 = vpop.f32.mrb[0].mxu0
      %v506 = vadd.f32 0.0, %v505
      %v507 = vpop.f32.mrb[0].mxu0
      %508 = vdwg.mxu0
      %v509 = vsub.f32 -inf, %v501
      %v510 = vsub.f32 -inf, %v506
      %v511 = vmul.f32 %v509, 1.442695
      %v512 = vpow.pop %v511
      %v513 = vmul.f32 %v510, 1.442695
      %v514 = vpow.pop %v513
      %v515 = vmul.f32 %v512, 0.0
      %v516 = vmul.f32 %v514, 0.0
      %v517 = vsub.f32 %v501, %v501
      %v518 = vsub.f32 %v506, %v506
      %v519 = vmul.f32 %v517, 1.442695
      %v520 = vpow.pop %v519
      %v521 = vmul.f32 %v518, 1.442695
      %v522 = vpow.pop %v521
      %v523 = vadd.f32 %v515, %v520
      %v524 = vadd.f32 %v516, %v522
      %vm525 = vcmp.eq.s32.totalorder %v424, 0
      %vm526 = vcmp.eq.s32.totalorder %v425, 0
      %v527 = vsel %vm525, %v501, 0.0
      %v528 = vsel %vm526, %v506, 0.0
      %s529 = scalar_lea.vmem [#allocation2], 8
      %v530 = vld [vmem:[%s529] sm:$0xff]
      %531 = vmatprep.subr.mxu0 0.0
      %532 = vmatpush1.msra.mxu0 %v530
      %533 = vmatprep.subr.mxu0 0.0
      %534 = vmatpush1.msra.mxu0 0.0
      %535 = vmatprep.subr.mxu0 0.0
      %536 = vmatpush1.msra.mxu0 0.0
      %537 = vmatprep.subr.mxu0 0.0
      %538 = vmatpush1.msra.mxu0 0.0
      %539 = vmatprep.subr.mxu0 0.0
      %540 = vmatpush1.msra.mxu0 0.0
      %541 = vmatprep.subr.mxu0 0.0
      %542 = vmatpush1.msra.mxu0 0.0
      %543 = vmatprep.subr.mxu0 0.0
      %544 = vmatpush1.msra.mxu0 0.0
      %545 = vmatprep.subr.mxu0 0.0
      %546 = vmatpush1.msra.mxu0 0.0
      %547 = vmatprep.subr.mxu0 0.0
      %548 = vmatpush1.msra.mxu0 0.0
      %549 = vmatprep.subr.mxu0 0.0
      %550 = vmatpush1.msra.mxu0 0.0
      %551 = vmatprep.subr.mxu0 0.0
      %552 = vmatpush1.msra.mxu0 0.0
      %553 = vmatprep.subr.mxu0 0.0
      %554 = vmatpush1.msra.mxu0 0.0
      %555 = vmatprep.subr.mxu0 0.0
      %556 = vmatpush1.msra.mxu0 0.0
      %557 = vmatprep.subr.mxu0 0.0
      %558 = vmatpush1.msra.mxu0 0.0
      %559 = vmatprep.subr.mxu0 0.0
      %560 = vmatpush1.msra.mxu0 0.0
      %561 = vmatprep.subr.mxu0 0.0
      %562 = vmatpush1.msra.mxu0 0.0
      %563 = vmatprep.subr.mxu0 0.0
      %564 = vmatpush1.msra.mxu0 0.0
      %565 = vmatprep.subr.mxu0 0.0
      %566 = vmatpush1.msra.mxu0 0.0
      %567 = vmatprep.subr.mxu0 0.0
      %568 = vmatpush1.msra.mxu0 0.0
      %569 = vmatprep.subr.mxu0 0.0
      %570 = vmatpush1.msra.mxu0 0.0
      %571 = vmatprep.subr.mxu0 0.0
      %572 = vmatpush1.msra.mxu0 0.0
      %573 = vmatprep.subr.mxu0 0.0
      %574 = vmatpush1.msra.mxu0 0.0
      %575 = vmatprep.subr.mxu0 0.0
      %576 = vmatpush1.msra.mxu0 0.0
      %577 = vmatprep.subr.mxu0 0.0
      %578 = vmatpush1.msra.mxu0 0.0
      %579 = vmatprep.subr.mxu0 0.0
      %580 = vmatpush1.msra.mxu0 0.0
      %581 = vmatprep.subr.mxu0 0.0
      %582 = vmatpush1.msra.mxu0 0.0
      %583 = vmatprep.subr.mxu0 0.0
      %584 = vmatpush1.msra.mxu0 0.0
      %585 = vmatprep.subr.mxu0 0.0
      %586 = vmatpush1.msra.mxu0 0.0
      %587 = vmatprep.subr.mxu0 0.0
      %588 = vmatpush1.msra.mxu0 0.0
      %589 = vmatprep.subr.mxu0 0.0
      %590 = vmatpush1.msra.mxu0 0.0
      %591 = vmatprep.subr.mxu0 0.0
      %592 = vmatpush1.msra.mxu0 0.0
      %593 = vmatprep.subr.mxu0 0.0
      %594 = vmatpush1.msra.mxu0 0.0
      %595 = vmatprep.mubr.f32.mxu0 0.0
      %596 = vmatmul.mubr.f32.gmra.mrb[0].mxu0 %v429
      %v597 = vpop.f32.mrb[0].mxu0
      %v598 = vadd.f32 0.0, %v597
      %v599 = vpop.f32.mrb[0].mxu0
      %600 = vmatprep.mubr.f32.mxu0 0.0
      %601 = vmatmul.mubr.f32.gmra.mrb[0].mxu0 %v432
      %v602 = vpop.f32.mrb[0].mxu0
      %v603 = vadd.f32 0.0, %v602
      %v604 = vpop.f32.mrb[0].mxu0
      %605 = vdwg.mxu0
      %v606 = vmax.f32 %v501, %v598
      %v607 = vmax.f32 %v506, %v603
      %v608 = vsub.f32 %v501, %v606
      %v609 = vsub.f32 %v506, %v607
      %v610 = vmul.f32 %v608, 1.442695
      %v611 = vpow.pop %v610
      %v612 = vmul.f32 %v609, 1.442695
      %v613 = vpow.pop %v612
      %v614 = vmul.f32 %v523, %v611
      %v615 = vmul.f32 %v524, %v613
      %v616 = vsub.f32 %v598, %v606
      %v617 = vsub.f32 %v603, %v607
      %v618 = vmul.f32 %v616, 1.442695
      %v619 = vpow.pop %v618
      %v620 = vmul.f32 %v617, 1.442695
      %v621 = vpow.pop %v620
      %v622 = vadd.f32 %v614, %v619
      %v623 = vadd.f32 %v615, %v621
      %vm624 = vcmp.eq.s32.totalorder %v424, 1
      %vm625 = vcmp.eq.s32.totalorder %v425, 1
      %v626 = vsel %vm624, %v598, %v527
      %v627 = vsel %vm625, %v603, %v528
      %s628 = scalar_lea.vmem [#allocation2], 16
      %v629 = vld [vmem:[%s628] sm:$0xff]
      %630 = vmatprep.subr.mxu0 0.0
      %631 = vmatpush1.msra.mxu0 %v629
      %632 = vmatprep.subr.mxu0 0.0
      %633 = vmatpush1.msra.mxu0 0.0
      %634 = vmatprep.subr.mxu0 0.0
      %635 = vmatpush1.msra.mxu0 0.0
      %636 = vmatprep.subr.mxu0 0.0
      %637 = vmatpush1.msra.mxu0 0.0
      %638 = vmatprep.subr.mxu0 0.0
      %639 = vmatpush1.msra.mxu0 0.0
      %640 = vmatprep.subr.mxu0 0.0
      %641 = vmatpush1.msra.mxu0 0.0
      %642 = vmatprep.subr.mxu0 0.0
      %643 = vmatpush1.msra.mxu0 0.0
      %644 = vmatprep.subr.mxu0 0.0
      %645 = vmatpush1.msra.mxu0 0.0
      %646 = vmatprep.subr.mxu0 0.0
      %647 = vmatpush1.msra.mxu0 0.0
      %648 = vmatprep.subr.mxu0 0.0
      %649 = vmatpush1.msra.mxu0 0.0
      %650 = vmatprep.subr.mxu0 0.0
      %651 = vmatpush1.msra.mxu0 0.0
      %652 = vmatprep.subr.mxu0 0.0
      %653 = vmatpush1.msra.mxu0 0.0
      %654 = vmatprep.subr.mxu0 0.0
      %655 = vmatpush1.msra.mxu0 0.0
      %656 = vmatprep.subr.mxu0 0.0
      %657 = vmatpush1.msra.mxu0 0.0
      %658 = vmatprep.subr.mxu0 0.0
      %659 = vmatpush1.msra.mxu0 0.0
      %660 = vmatprep.subr.mxu0 0.0
      %661 = vmatpush1.msra.mxu0 0.0
      %662 = vmatprep.subr.mxu0 0.0
      %663 = vmatpush1.msra.mxu0 0.0
      %664 = vmatprep.subr.mxu0 0.0
      %665 = vmatpush1.msra.mxu0 0.0
      %666 = vmatprep.subr.mxu0 0.0
      %667 = vmatpush1.msra.mxu0 0.0
      %668 = vmatprep.subr.mxu0 0.0
      %669 = vmatpush1.msra.mxu0 0.0
      %670 = vmatprep.subr.mxu0 0.0
      %671 = vmatpush1.msra.mxu0 0.0
      %672 = vmatprep.subr.mxu0 0.0
      %673 = vmatpush1.msra.mxu0 0.0
      %674 = vmatprep.subr.mxu0 0.0
      %675 = vmatpush1.msra.mxu0 0.0
      %676 = vmatprep.subr.mxu0 0.0
      %677 = vmatpush1.msra.mxu0 0.0
      %678 = vmatprep.subr.mxu0 0.0
      %679 = vmatpush1.msra.mxu0 0.0
      %680 = vmatprep.subr.mxu0 0.0
      %681 = vmatpush1.msra.mxu0 0.0
      %682 = vmatprep.subr.mxu0 0.0
      %683 = vmatpush1.msra.mxu0 0.0
      %684 = vmatprep.subr.mxu0 0.0
      %685 = vmatpush1.msra.mxu0 0.0
      %686 = vmatprep.subr.mxu0 0.0
      %687 = vmatpush1.msra.mxu0 0.0
      %688 = vmatprep.subr.mxu0 0.0
      %689 = vmatpush1.msra.mxu0 0.0
      %690 = vmatprep.subr.mxu0 0.0
      %691 = vmatpush1.msra.mxu0 0.0
      %692 = vmatprep.subr.mxu0 0.0
      %693 = vmatpush1.msra.mxu0 0.0
      %694 = vmatprep.mubr.f32.mxu0 0.0
      %695 = vmatmul.mubr.f32.gmra.mrb[0].mxu0 %v429
      %v696 = vpop.f32.mrb[0].mxu0
      %v697 = vadd.f32 0.0, %v696
      %v698 = vpop.f32.mrb[0].mxu0
      %699 = vmatprep.mubr.f32.mxu0 0.0
      %700 = vmatmul.mubr.f32.gmra.mrb[0].mxu0 %v432
      %v701 = vpop.f32.mrb[0].mxu0
      %v702 = vadd.f32 0.0, %v701
      %v703 = vpop.f32.mrb[0].mxu0
      %704 = vdwg.mxu0
      %v705 = vmax.f32 %v606, %v697
      %v706 = vmax.f32 %v607, %v702
      %v707 = vsub.f32 %v606, %v705
      %v708 = vsub.f32 %v607, %v706
      %v709 = vmul.f32 %v707, 1.442695
      %v710 = vpow.pop %v709
      %v711 = vmul.f32 %v708, 1.442695
      %v712 = vpow.pop %v711
      %v713 = vmul.f32 %v622, %v710
      %v714 = vmul.f32 %v623, %v712
      %v715 = vsub.f32 %v697, %v705
      %v716 = vsub.f32 %v702, %v706
      %v717 = vmul.f32 %v715, 1.442695
      %v718 = vpow.pop %v717
      %v719 = vmul.f32 %v716, 1.442695
      %v720 = vpow.pop %v719
      %v721 = vadd.f32 %v713, %v718
      %v722 = vadd.f32 %v714, %v720
      %vm723 = vcmp.eq.s32.totalorder %v424, 2
      %vm724 = vcmp.eq.s32.totalorder %v425, 2
      %v725 = vsel %vm723, %v697, %v626
      %v726 = vsel %vm724, %v702, %v627
      %s727 = scalar_lea.vmem [#allocation2], 24
      %v728 = vld [vmem:[%s727] sm:$0xff]
      %729 = vmatprep.subr.mxu0 0.0
      %730 = vmatpush1.msra.mxu0 %v728
      %731 = vmatprep.subr.mxu0 0.0
      %732 = vmatpush1.msra.mxu0 0.0
      %733 = vmatprep.subr.mxu0 0.0
      %734 = vmatpush1.msra.mxu0 0.0
      %735 = vmatprep.subr.mxu0 0.0
      %736 = vmatpush1.msra.mxu0 0.0
      %737 = vmatprep.subr.mxu0 0.0
      %738 = vmatpush1.msra.mxu0 0.0
      %739 = vmatprep.subr.mxu0 0.0
      %740 = vmatpush1.msra.mxu0 0.0
      %741 = vmatprep.subr.mxu0 0.0
      %742 = vmatpush1.msra.mxu0 0.0
      %743 = vmatprep.subr.mxu0 0.0
      %744 = vmatpush1.msra.mxu0 0.0
      %745 = vmatprep.subr.mxu0 0.0
      %746 = vmatpush1.msra.mxu0 0.0
      %747 = vmatprep.subr.mxu0 0.0
      %748 = vmatpush1.msra.mxu0 0.0
      %749 = vmatprep.subr.mxu0 0.0
      %750 = vmatpush1.msra.mxu0 0.0
      %751 = vmatprep.subr.mxu0 0.0
      %752 = vmatpush1.msra.mxu0 0.0
      %753 = vmatprep.subr.mxu0 0.0
      %754 = vmatpush1.msra.mxu0 0.0
      %755 = vmatprep.subr.mxu0 0.0
      %756 = vmatpush1.msra.mxu0 0.0
      %757 = vmatprep.subr.mxu0 0.0
      %758 = vmatpush1.msra.mxu0 0.0
      %759 = vmatprep.subr.mxu0 0.0
      %760 = vmatpush1.msra.mxu0 0.0
      %761 = vmatprep.subr.mxu0 0.0
      %762 = vmatpush1.msra.mxu0 0.0
      %763 = vmatprep.subr.mxu0 0.0
      %764 = vmatpush1.msra.mxu0 0.0
      %765 = vmatprep.subr.mxu0 0.0
      %766 = vmatpush1.msra.mxu0 0.0
      %767 = vmatprep.subr.mxu0 0.0
      %768 = vmatpush1.msra.mxu0 0.0
      %769 = vmatprep.subr.mxu0 0.0
      %770 = vmatpush1.msra.mxu0 0.0
      %771 = vmatprep.subr.mxu0 0.0
      %772 = vmatpush1.msra.mxu0 0.0
      %773 = vmatprep.subr.mxu0 0.0
      %774 = vmatpush1.msra.mxu0 0.0
      %775 = vmatprep.subr.mxu0 0.0
      %776 = vmatpush1.msra.mxu0 0.0
      %777 = vmatprep.subr.mxu0 0.0
      %778 = vmatpush1.msra.mxu0 0.0
      %779 = vmatprep.subr.mxu0 0.0
      %780 = vmatpush1.msra.mxu0 0.0
      %781 = vmatprep.subr.mxu0 0.0
      %782 = vmatpush1.msra.mxu0 0.0
      %783 = vmatprep.subr.mxu0 0.0
      %784 = vmatpush1.msra.mxu0 0.0
      %785 = vmatprep.subr.mxu0 0.0
      %786 = vmatpush1.msra.mxu0 0.0
      %787 = vmatprep.subr.mxu0 0.0
      %788 = vmatpush1.msra.mxu0 0.0
      %789 = vmatprep.subr.mxu0 0.0
      %790 = vmatpush1.msra.mxu0 0.0
      %791 = vmatprep.subr.mxu0 0.0
      %792 = vmatpush1.msra.mxu0 0.0
      %793 = vmatprep.mubr.f32.mxu0 0.0
      %794 = vmatmul.mubr.f32.gmra.mrb[0].mxu0 %v429
      %v795 = vpop.f32.mrb[0].mxu0
      %v796 = vadd.f32 0.0, %v795
      %v797 = vpop.f32.mrb[0].mxu0
      %798 = vmatprep.mubr.f32.mxu0 0.0
      %799 = vmatmul.mubr.f32.gmra.mrb[0].mxu0 %v432
      %v800 = vpop.f32.mrb[0].mxu0
      %v801 = vadd.f32 0.0, %v800
      %v802 = vpop.f32.mrb[0].mxu0
      %803 = vdwg.mxu0
      %v804 = vmax.f32 %v705, %v796
      %v805 = vmax.f32 %v706, %v801
      %v806 = vsub.f32 %v705, %v804
      %v807 = vsub.f32 %v706, %v805
      %v808 = vmul.f32 %v806, 1.442695
      %v809 = vpow.pop %v808
      %v810 = vmul.f32 %v807, 1.442695
      %v811 = vpow.pop %v810
      %v812 = vmul.f32 %v721, %v809
      %v813 = vmul.f32 %v722, %v811
      %v814 = vsub.f32 %v796, %v804
      %v815 = vsub.f32 %v801, %v805
      %v816 = vmul.f32 %v814, 1.442695
      %v817 = vpow.pop %v816
      %v818 = vmul.f32 %v815, 1.442695
      %v819 = vpow.pop %v818
      %v820 = vadd.f32 %v812, %v817
      %v821 = vadd.f32 %v813, %v819
      %vm822 = vcmp.eq.s32.totalorder %v424, 3
      %vm823 = vcmp.eq.s32.totalorder %v425, 3
      %v824 = vsel %vm822, %v796, %v725
      %v825 = vsel %vm823, %v801, %v726
      %v826 = vlog2.pop %v820
      %v827 = vmul.f32 %v826, 0.6931472
      %v828 = vlog2.pop %v821
      %v829 = vmul.f32 %v828, 0.6931472
      %v830 = vadd.f32 %v804, %v827
      %v831 = vadd.f32 %v805, %v829
      %v832 = vsub.f32 %v830, %v824
      %v833 = vsub.f32 %v831, %v825
      %vm834 = vcmask 130048
      %v835 = vsel %vm834, %v832, 0.0
      %836 = vadd.xlane.f32.xlu0 %v835
      %v837 = vpop.xlane.xlu0 %836
      %v838 = vsel %vm834, %v833, 0.0
      %839 = vadd.xlane.f32.xlu0 %v838
      %v840 = vpop.xlane.xlu0 %839
      %vm841 = vcmask 7168
      %842 = vst.msk [vmem:[%s308] sm:$0xff] %vm841, %v837
      %843 = vst.msk [vmem:[%s308 + $0x8] sm:$0xff] %vm841, %v840
      %s844 = smul.u32 2, %s22
      %p845 = scmp.lt.s32.totalorder %s20, 1
      %s846 = scalar_select %p845, %s20, 1
      %p847 = scmp.lt.s32.totalorder %s21, 1
      %s848 = scalar_select %p847, %s21, 1
      %p849 = scmp.lt.s32.totalorder %s844, 1
      %s850 = scalar_select %p849, %s844, 1
      %s851 = smul.addr %s848, 2
      %s852 = sadd.s32 %s850, %s851
      %s853 = smul.addr %s846, 4
      %s854 = sadd.s32 %s852, %s853
      %s855 = smul.addr %s854, 8
      %s856 = scalar_lea.vmem %s4, %s855
      // Predicated region
      $region41: #{tpu_custom_call.1} parent=35 // pred_check
        %p857 = pneg %p159
      $region42: #{tpu_custom_call.1} parent=35 // pred_check_branch
        %859 = sbr.rel (%p857) target = $region44
      $region43: #{tpu_custom_call.1} parent=35 // pred_region
        %s860 = smul.u32 2, %s22
      $region44: #{tpu_custom_call.1} parent=35 // pred_fallthru
        _
    $region36: #{tpu_custom_call.1} parent=5 // pred_fallthru
      _
    %p861 = scmp.le.s32.totalorder 2, %s10
    // Predicated region
    $region45: #{tpu_custom_call.1} parent=5 // pred_check
      %p862 = pneg %p861
    $region46: #{tpu_custom_call.1} parent=5 // pred_check_branch
      %864 = sbr.rel (%p862) target = $region48
    $region47: #{tpu_custom_call.1} parent=5 // pred_region
      %s865 = ssub.s32 %s10, 2
      // Predicated region
      $region49: #{tpu_custom_call.1} parent=47 // pred_check
        %p866 = pneg %p165
      $region50: #{tpu_custom_call.1} parent=47 // pred_check_branch
        %868 = sbr.rel (%p866) target = $region52
      $region51: #{tpu_custom_call.1} parent=47 // pred_region
        %s869 = smul.u32 2, %s25
        %p870 = scmp.lt.s32.totalorder %s23, 1
        %s871 = scalar_select %p870, %s23, 1
        %p872 = scmp.lt.s32.totalorder %s24, 1
        %s873 = scalar_select %p872, %s24, 1
        %p874 = scmp.lt.s32.totalorder %s869, 1
        %s875 = scalar_select %p874, %s869, 1
        %s876 = smul.addr %s873, 2
        %s877 = sadd.s32 %s875, %s876
        %s878 = smul.addr %s871, 4
        %s879 = sadd.s32 %s877, %s878
        %s880 = smul.addr %s879, 8
        %s881 = scalar_lea.vmem %s4, %s880
      $region52: #{tpu_custom_call.1} parent=47 // pred_fallthru
        _
    $region48: #{tpu_custom_call.1} parent=5 // pred_fallthru
      _
  $region6: #{tpu_custom_call.1} parent=0 // loop_footer
    %s14 = sadd.s32 1, %s10
  $region7: #{tpu_custom_call.1} parent=0 // loop_footer_branch
    %9 = sbr.rel target = $region3
  $region8: #{tpu_custom_call.1} parent=0 // loop_exit
    _

</llo_original>
